<compile_context>
chip_gen: v7x
topology: tpu7x:2x2x1
jax: 0.10.0
libtpu: 0.0.40
codegen_flags: <defaults>
</compile_context>

<pallas_src>
import functools

import jax
import jax.numpy as jnp
from jax import lax
from jax.experimental import pallas as pl
from jax.experimental.pallas import tpu as pltpu

_EPS = 0.01
_PPLANE = 7          # per-plane params: nx, nz, d, max_x, min_x, max_z, min_z
_UNROLL_LIMIT = 12   # fully unroll the plane loop up to this many planes


def _corner2depth_kernel(params_ref, grid_ref, depth_ref, normal_ref, *,
                         num_planes, eps):
    """One (H-tile, batch) grid step: intersect each pixel ray with every wall."""
    b = pl.program_id(1)                     # batch is the inner grid axis
    gx = grid_ref[0]                         # (tile_h, Wp)
    gz = grid_ref[1]

    def plane(j):
        base = j * _PPLANE
        nx = params_ref[b, base + 0]
        nz = params_ref[b, base + 1]
        d = params_ref[b, base + 2]
        max_x = params_ref[b, base + 3]
        min_x = params_ref[b, base + 4]
        max_z = params_ref[b, base + 5]
        min_z = params_ref[b, base + 6]
        denom = gx * nx + gz * nz             # ny == 0 always -> no gy term
        rcp = pl.reciprocal(denom, approx=True)
        rcp = rcp * (2.0 - denom * rcp)       # one Newton step (keeps 1e-4 tol)
        scale = (-d) * rcp                    # ray parameter of the plane hit
        ix = scale * gx                       # intersection x / z coordinates
        iz = scale * gz
        hit = ((ix <= max_x + eps) & (ix >= min_x - eps)
               & (iz <= max_z + eps) & (iz >= min_z - eps)
               & (scale > 0.0))
        return nx, nz, scale, hit

    # Peeled plane 0: also provides torch.min's tie-break normal (arg-min of an
    # all-inf row is 0) for rays that hit no wall.
    nx0, nz0, s0, hit0 = plane(0)
    depth = jnp.where(hit0, s0, jnp.float32(jnp.inf))
    bnx = jnp.full(gx.shape, nx0, dtype=jnp.float32)
    bnz = jnp.full(gx.shape, nz0, dtype=jnp.float32)

    def update(j, depth, bnx, bnz):
        nx, nz, s, hit = plane(j)
        better = hit & (s < depth)            # strict '<': earliest plane on ties
        return (jnp.where(better, s, depth),
                jnp.where(better, nx, bnx),
                jnp.where(better, nz, bnz))

    if num_planes <= _UNROLL_LIMIT:
        for j in range(1, num_planes):        # small static loop -> unrolled
            depth, bnx, bnz = update(j, depth, bnx, bnz)
    else:
        depth, bnx, bnz = lax.fori_loop(
            1, num_planes, lambda j, c: update(j, *c),
            (depth, bnx, bnz), unroll=4)

    depth_ref[0] = depth
    normal_ref[0, 0] = bnx
    normal_ref[0, 1] = bnz


def _plane_params(corners, nums, *, normalize, d_from_next):
    """Per-wall plane parameters, padded so planes beyond `nums[i]` never hit.

    corners: (B, N, 3) f32, nums: (B,) int32  ->  (B, N, 7) f32
    """
    _, N, _ = corners.shape
    idx = jnp.arange(N)

    def per_batch(c, num):
        nxt = jnp.where(idx + 1 >= num, 0, idx + 1)   # wrap-around at `num`
        c_next = c[nxt]                               # (N, 3)
        diff = c_next - c
        nx = -diff[:, 2]                              # cross(diff, y-axis); ny == 0
        nz = diff[:, 0]
        if normalize:
            norm = jnp.sqrt(nx * nx + nz * nz)
            nx = nx / norm
            nz = nz / norm
        anchor = c_next if d_from_next else c
        d = -(nx * anchor[:, 0] + nz * anchor[:, 2])

        valid = idx < num
        big = jnp.float32(jnp.finfo(jnp.float32).max)
        # Invalid planes get impossible x/z bounds, so `hit` is always false
        # regardless of what -d/denom evaluates to (robust rejection).
        max_x = jnp.where(valid, jnp.maximum(c[:, 0], c_next[:, 0]), -big)
        min_x = jnp.where(valid, jnp.minimum(c[:, 0], c_next[:, 0]), big)
        max_z = jnp.where(valid, jnp.maximum(c[:, 2], c_next[:, 2]), -big)
        min_z = jnp.where(valid, jnp.minimum(c[:, 2], c_next[:, 2]), big)
        nx = jnp.where(valid, nx, 0.0)
        nz = jnp.where(valid, nz, 0.0)
        d = jnp.where(valid, d, 1.0)
        return jnp.stack([nx, nz, d, max_x, min_x, max_z, min_z], axis=1)

    return jax.vmap(per_batch)(corners, nums)


def _vmem_budget_and_limit():
    """Generation-aware per-block working-set budget and scoped-VMEM limit."""
    cap = 64 * 1024 * 1024                    # conservative default (v7x per-TC)
    try:
        info = pltpu.get_tpu_info()
        cap = int(getattr(info, "vmem_capacity_bytes", cap))
    except Exception:
        pass
    budget = cap // 6                         # block working set (bufs + temps)
    limit = int(min(96 * 1024 * 1024, (cap * 3) // 4))
    return budget, limit


def _pick_tile_h(Hp, Wp, budget_bytes):
    # ~10 double-buffered in/out planes + ~8 live (tile_h, Wp) loop temporaries.
    row_bytes = 18 * Wp * 4
    if Hp % 8 != 0 or Hp * row_bytes <= budget_bytes:
        return Hp
    divs = [th for th in range(8, Hp + 1, 8) if Hp % th == 0]
    if not divs:
        return Hp
    fitting = [th for th in divs if th * row_bytes <= budget_bytes]
    return max(fitting) if fitting else min(divs)


def corner2depth(grid, corners, nums, shift=None, mode="origin", *, tile_h=None):
    """JAX/Pallas equivalent of Corner2Depth.forward -> (depth (B,1,H,W), normal (B,H,W,3))."""
    grid = jnp.asarray(grid, jnp.float32)
    if grid.ndim == 4:
        grid = grid[0]                                  # (H, W, 3)
    H, W, _ = grid.shape
    corners = jnp.asarray(corners, jnp.float32)
    B, N, _ = corners.shape

    if mode == "origin":
        if shift is not None:
            shift = jnp.asarray(shift, jnp.float32)
            corners = corners.at[..., 0].add(-shift[:, 0][:, None])
            corners = corners.at[..., 2].add(-shift[:, 1][:, None])
        nums_arr = jnp.asarray(nums, jnp.int32)
        params = _plane_params(corners, nums_arr, normalize=True, d_from_next=True)
    else:  # 'fast': all corners used, plane normals left unnormalized (matches torch)
        if shift is not None:
            raise NotImplementedError
        nums_arr = jnp.full((B,), N, jnp.int32)
        params = _plane_params(corners, nums_arr, normalize=False, d_from_next=False)
    params = params.reshape(B, N * _PPLANE)             # 2-D, SMEM-friendly

    # Lane-dense pixel layout: keep (H, W) if W is a lane multiple, otherwise
    # fold the flat pixel axis into full 128-wide lanes (math is per-pixel).
    P = H * W
    if W % 128 == 0:
        Hp, Wp = H, W
    elif P % 128 == 0:
        Hp, Wp = P // 128, 128
    else:
        Hp, Wp = H, W            # fallback: full-array blocks (masked lanes)
    grid_xz = jnp.stack(
        [grid[..., 0].reshape(Hp, Wp), grid[..., 2].reshape(Hp, Wp)], axis=0)

    budget, vmem_limit = _vmem_budget_and_limit()
    if tile_h is None:
        tile_h = _pick_tile_h(Hp, Wp, budget)
    if Hp % tile_h != 0 or (tile_h != Hp and tile_h % 8 != 0):
        tile_h = Hp
    n_h = Hp // tile_h

    kernel = functools.partial(_corner2depth_kernel, num_planes=N, eps=_EPS)
    flops = 22 * B * N * Hp * Wp
    bytes_accessed = 4 * (2 * Hp * Wp + B * 3 * Hp * Wp + B * N * _PPLANE)

    depth, normal_xz = pl.pallas_call(
        kernel,
        out_shape=(
            jax.ShapeDtypeStruct((B, Hp, Wp), jnp.float32),
            jax.ShapeDtypeStruct((B, 2, Hp, Wp), jnp.float32),
        ),
        grid_spec=pltpu.PrefetchScalarGridSpec(
            num_scalar_prefetch=0,
            grid=(n_h, B),       # H-tiles outermost (megacore), batch innermost
            in_specs=[
                # per-plane scalars: whole array in SMEM (cheap scalar reads)
                pl.BlockSpec(memory_space=pltpu.MemorySpace.SMEM),
                # shared ray grid: block index independent of b -> stays
                # resident across the inner batch loop (fetched n_h times total)
                pl.BlockSpec((2, tile_h, Wp), lambda h, b: (0, h, 0)),
            ],
            out_specs=(
                pl.BlockSpec((1, tile_h, Wp), lambda h, b: (b, h, 0)),
                pl.BlockSpec((1, 2, tile_h, Wp), lambda h, b: (b, 0, h, 0)),
            ),
        ),
        compiler_params=pltpu.CompilerParams(
            dimension_semantics=("parallel", "parallel"),
            vmem_limit_bytes=vmem_limit,
        ),
        cost_estimate=pl.CostEstimate(
            flops=flops, transcendentals=B * N * Hp * Wp,
            bytes_accessed=bytes_accessed),
    )(params, grid_xz)

    depth = depth.reshape(B, 1, H, W)
    nxz = normal_xz.reshape(B, 2, H, W)
    # ny is identically 0 for every wall plane; assemble channel-last here.
    normal = jnp.stack([nxz[:, 0], jnp.zeros_like(nxz[:, 0]), nxz[:, 1]], axis=-1)
    return depth, normal


def corner2depth_ref(grid, corners, nums, eps=_EPS):
    """Pure-JAX transcription of Corner2Depth.forward_origin (shift=None)."""
    g = jnp.asarray(grid, jnp.float32)
    if g.ndim == 4:
        g = g[0]
    corners = jnp.asarray(corners, jnp.float32)
    depth_maps, normal_maps = [], []
    for i, num in enumerate(nums):
        c = jnp.concatenate([corners[i, :num], corners[i, 0:1]], axis=0)  # (num+1, 3)
        diff = c[1:] - c[:-1]
        n = jnp.stack([-diff[:, 2], jnp.zeros_like(diff[:, 2]), diff[:, 0]], axis=1)
        n = n / jnp.linalg.norm(n, axis=1, keepdims=True)
        d = -jnp.sum(n * c[1:], axis=1)                                   # (num,)
        denom = (g[..., 0:1] * n[:, 0] + g[..., 1:2] * n[:, 1]
                 + g[..., 2:3] * n[:, 2])                                 # (H, W, num)
        scale = -d / denom
        ix = scale * g[..., 0:1]
        iz = scale * g[..., 2:3]
        max_x = jnp.maximum(c[1:, 0], c[:-1, 0])
        min_x = jnp.minimum(c[1:, 0], c[:-1, 0])
        max_z = jnp.maximum(c[1:, 2], c[:-1, 2])
        min_z = jnp.minimum(c[1:, 2], c[:-1, 2])
        hit = ((ix <= max_x + eps) & (ix >= min_x - eps)
               & (iz <= max_z + eps) & (iz >= min_z - eps) & (scale > 0))
        s = jnp.where(hit, scale, jnp.inf)
        depth = jnp.min(s, axis=-1)                     # (H, W)
        min_idx = jnp.argmin(s, axis=-1)                # (H, W)
        normal = n[min_idx]                             # (H, W, 3)
        depth_maps.append(depth[None, None])
        normal_maps.append(normal[None])
    return jnp.concatenate(depth_maps, 0), jnp.concatenate(normal_maps, 0)


if __name__ == "__main__":
    key = jax.random.PRNGKey(0)
    B, N, H, W = 2, 6, 16, 32
    nums = (6, 4)   # batch 1 only uses its first 4 corners (tests plane masking)

    # Equirectangular unit-ray grid (1, H, W, 3), same role as LED2-Net's grid.
    v = (jnp.arange(H, dtype=jnp.float32) + 0.5) / H
    u = (jnp.arange(W, dtype=jnp.float32) + 0.5) / W
    theta = (v - 0.5) * jnp.pi
    phi = (u - 0.5) * 2.0 * jnp.pi
    ct = jnp.cos(theta)[:, None]
    gx = ct * jnp.sin(phi)[None, :]
    gy = jnp.broadcast_to(jnp.sin(theta)[:, None], (H, W))
    gz = ct * jnp.cos(phi)[None, :]
    grid = jnp.stack([gx, gy, gz], axis=-1)[None]        # (1, H, W, 3)

    # Room-layout style corners around the origin (x, y, z).
    k1, k2, k3 = jax.random.split(key, 3)
    ang = jnp.sort(jax.random.uniform(k1, (B, N), minval=0.0, maxval=2.0 * jnp.pi), axis=1)
    rad = jax.random.uniform(k2, (B, N), minval=1.2, maxval=2.5)
    ys = jax.random.uniform(k3, (B, N), minval=-1.6, maxval=-1.2)
    corners = jnp.stack([rad * jnp.cos(ang), ys, rad * jnp.sin(ang)], axis=-1)

    depth, normal = corner2depth(grid, corners, nums)    # mode='origin' (default)
    depth, normal = jax.block_until_ready((depth, normal))

    d_ref, n_ref = corner2depth_ref(grid, corners, nums)
    assert depth.shape == (B, 1, H, W), depth.shape
    assert normal.shape == (B, H, W, 3), normal.shape
    assert jnp.allclose(depth, d_ref, rtol=1e-4, atol=1e-4), "depth mismatch"
    assert jnp.allclose(normal, n_ref, rtol=1e-4, atol=1e-4), "normal mismatch"

    print("KERNEL_OK")
</pallas_src>

<mosaic_0001>
module attributes {stable_mosaic.version = 11 : i64} {
  func.func @_corner2depth_kernel(%arg0: i32, %arg1: i32, %arg2: memref<2x42xf32, #tpu.memory_space<smem>>, %arg3: memref<2x4x128xf32, #tpu.memory_space<vmem>>, %arg4: memref<1x4x128xf32, #tpu.memory_space<vmem>>, %arg5: memref<1x2x4x128xf32, #tpu.memory_space<vmem>>) attributes {dimension_semantics = [#tpu.dimension_semantics<parallel>, #tpu.dimension_semantics<parallel>], iteration_bounds = array<i64: 1, 2>, scalar_prefetch = 0 : i64, scratch_operands = 0 : i64, tpu.core_type = #tpu.core_type<tc>, window_params = [{transform_indices = @transform_0, window_bounds = array<i64: 2, 42>}, {transform_indices = @transform_1, window_bounds = array<i64: 2, 4, 128>}, {transform_indices = @transform_2, window_bounds = array<i64: 1, 4, 128>}, {transform_indices = @transform_3, window_bounds = array<i64: 1, 2, 4, 128>}]} {
    %c0 = arith.constant 0 : index
    %c0_0 = arith.constant 0 : index
    %c0_1 = arith.constant 0 : index
    %0 = vector.load %arg3[%c0, %c0_0, %c0_1] : memref<2x4x128xf32, #tpu.memory_space<vmem>>, vector<1x4x128xf32>
    %1 = vector.shape_cast %0 : vector<1x4x128xf32> to vector<4x128xf32>
    %c1 = arith.constant 1 : index
    %c0_2 = arith.constant 0 : index
    %c0_3 = arith.constant 0 : index
    %2 = vector.load %arg3[%c1, %c0_2, %c0_3] : memref<2x4x128xf32, #tpu.memory_space<vmem>>, vector<1x4x128xf32>
    %3 = vector.shape_cast %2 : vector<1x4x128xf32> to vector<4x128xf32>
    %4 = arith.index_cast %arg1 : i32 to index
    %c0_4 = arith.constant 0 : index
    %5 = memref.load %arg2[%4, %c0_4] : memref<2x42xf32, #tpu.memory_space<smem>>
    %6 = arith.index_cast %arg1 : i32 to index
    %c1_5 = arith.constant 1 : index
    %7 = memref.load %arg2[%6, %c1_5] : memref<2x42xf32, #tpu.memory_space<smem>>
    %8 = arith.index_cast %arg1 : i32 to index
    %c2 = arith.constant 2 : index
    %9 = memref.load %arg2[%8, %c2] : memref<2x42xf32, #tpu.memory_space<smem>>
    %10 = arith.index_cast %arg1 : i32 to index
    %c3 = arith.constant 3 : index
    %11 = memref.load %arg2[%10, %c3] : memref<2x42xf32, #tpu.memory_space<smem>>
    %12 = arith.index_cast %arg1 : i32 to index
    %c4 = arith.constant 4 : index
    %13 = memref.load %arg2[%12, %c4] : memref<2x42xf32, #tpu.memory_space<smem>>
    %14 = arith.index_cast %arg1 : i32 to index
    %c5 = arith.constant 5 : index
    %15 = memref.load %arg2[%14, %c5] : memref<2x42xf32, #tpu.memory_space<smem>>
    %16 = arith.index_cast %arg1 : i32 to index
    %c6 = arith.constant 6 : index
    %17 = memref.load %arg2[%16, %c6] : memref<2x42xf32, #tpu.memory_space<smem>>
    %18 = vector.broadcast %5 : f32 to vector<4x128xf32>
    %19 = arith.mulf %1, %18 : vector<4x128xf32>
    %20 = vector.broadcast %7 : f32 to vector<4x128xf32>
    %21 = arith.mulf %3, %20 : vector<4x128xf32>
    %22 = arith.addf %19, %21 : vector<4x128xf32>
    %23 = tpu.reciprocal %22 {approx = true} : vector<4x128xf32> -> vector<4x128xf32>
    %24 = arith.mulf %22, %23 : vector<4x128xf32>
    %cst = arith.constant 2.000000e+00 : f32
    %25 = vector.broadcast %cst : f32 to vector<4x128xf32>
    %26 = arith.subf %25, %24 : vector<4x128xf32>
    %27 = arith.mulf %23, %26 : vector<4x128xf32>
    %cst_6 = arith.constant 0.000000e+00 : f32
    %28 = arith.subf %cst_6, %9 : f32
    %29 = vector.broadcast %28 : f32 to vector<4x128xf32>
    %30 = arith.mulf %29, %27 : vector<4x128xf32>
    %31 = arith.mulf %30, %1 : vector<4x128xf32>
    %32 = arith.mulf %30, %3 : vector<4x128xf32>
    %cst_7 = arith.constant 0.00999999977 : f32
    %33 = arith.addf %11, %cst_7 : f32
    %34 = vector.broadcast %33 : f32 to vector<4x128xf32>
    %35 = arith.cmpf ole, %31, %34 : vector<4x128xf32>
    %cst_8 = arith.constant 0.00999999977 : f32
    %36 = arith.subf %13, %cst_8 : f32
    %37 = vector.broadcast %36 : f32 to vector<4x128xf32>
    %38 = arith.cmpf oge, %31, %37 : vector<4x128xf32>
    %39 = arith.andi %35, %38 : vector<4x128xi1>
    %cst_9 = arith.constant 0.00999999977 : f32
    %40 = arith.addf %15, %cst_9 : f32
    %41 = vector.broadcast %40 : f32 to vector<4x128xf32>
    %42 = arith.cmpf ole, %32, %41 : vector<4x128xf32>
    %43 = arith.andi %39, %42 : vector<4x128xi1>
    %cst_10 = arith.constant 0.00999999977 : f32
    %44 = arith.subf %17, %cst_10 : f32
    %45 = vector.broadcast %44 : f32 to vector<4x128xf32>
    %46 = arith.cmpf oge, %32, %45 : vector<4x128xf32>
    %47 = arith.andi %43, %46 : vector<4x128xi1>
    %cst_11 = arith.constant 0.000000e+00 : f32
    %48 = vector.broadcast %cst_11 : f32 to vector<4x128xf32>
    %49 = arith.cmpf ogt, %30, %48 : vector<4x128xf32>
    %50 = arith.andi %47, %49 : vector<4x128xi1>
    %cst_12 = arith.constant 0x7F800000 : f32
    %51 = vector.broadcast %cst_12 : f32 to vector<4x128xf32>
    %52 = arith.select %50, %30, %51 : vector<4x128xi1>, vector<4x128xf32>
    %53 = vector.broadcast %5 : f32 to vector<4x128xf32>
    %54 = vector.broadcast %7 : f32 to vector<4x128xf32>
    %55 = arith.index_cast %arg1 : i32 to index
    %c7 = arith.constant 7 : index
    %56 = memref.load %arg2[%55, %c7] : memref<2x42xf32, #tpu.memory_space<smem>>
    %57 = arith.index_cast %arg1 : i32 to index
    %c8 = arith.constant 8 : index
    %58 = memref.load %arg2[%57, %c8] : memref<2x42xf32, #tpu.memory_space<smem>>
    %59 = arith.index_cast %arg1 : i32 to index
    %c9 = arith.constant 9 : index
    %60 = memref.load %arg2[%59, %c9] : memref<2x42xf32, #tpu.memory_space<smem>>
    %61 = arith.index_cast %arg1 : i32 to index
    %c10 = arith.constant 10 : index
    %62 = memref.load %arg2[%61, %c10] : memref<2x42xf32, #tpu.memory_space<smem>>
    %63 = arith.index_cast %arg1 : i32 to index
    %c11 = arith.constant 11 : index
    %64 = memref.load %arg2[%63, %c11] : memref<2x42xf32, #tpu.memory_space<smem>>
    %65 = arith.index_cast %arg1 : i32 to index
    %c12 = arith.constant 12 : index
    %66 = memref.load %arg2[%65, %c12] : memref<2x42xf32, #tpu.memory_space<smem>>
    %67 = arith.index_cast %arg1 : i32 to index
    %c13 = arith.constant 13 : index
    %68 = memref.load %arg2[%67, %c13] : memref<2x42xf32, #tpu.memory_space<smem>>
    %69 = vector.broadcast %56 : f32 to vector<4x128xf32>
    %70 = arith.mulf %1, %69 : vector<4x128xf32>
    %71 = vector.broadcast %58 : f32 to vector<4x128xf32>
    %72 = arith.mulf %3, %71 : vector<4x128xf32>
    %73 = arith.addf %70, %72 : vector<4x128xf32>
    %74 = tpu.reciprocal %73 {approx = true} : vector<4x128xf32> -> vector<4x128xf32>
    %75 = arith.mulf %73, %74 : vector<4x128xf32>
    %cst_13 = arith.constant 2.000000e+00 : f32
    %76 = vector.broadcast %cst_13 : f32 to vector<4x128xf32>
    %77 = arith.subf %76, %75 : vector<4x128xf32>
    %78 = arith.mulf %74, %77 : vector<4x128xf32>
    %cst_14 = arith.constant 0.000000e+00 : f32
    %79 = arith.subf %cst_14, %60 : f32
    %80 = vector.broadcast %79 : f32 to vector<4x128xf32>
    %81 = arith.mulf %80, %78 : vector<4x128xf32>
    %82 = arith.mulf %81, %1 : vector<4x128xf32>
    %83 = arith.mulf %81, %3 : vector<4x128xf32>
    %cst_15 = arith.constant 0.00999999977 : f32
    %84 = arith.addf %62, %cst_15 : f32
    %85 = vector.broadcast %84 : f32 to vector<4x128xf32>
    %86 = arith.cmpf ole, %82, %85 : vector<4x128xf32>
    %cst_16 = arith.constant 0.00999999977 : f32
    %87 = arith.subf %64, %cst_16 : f32
    %88 = vector.broadcast %87 : f32 to vector<4x128xf32>
    %89 = arith.cmpf oge, %82, %88 : vector<4x128xf32>
    %90 = arith.andi %86, %89 : vector<4x128xi1>
    %cst_17 = arith.constant 0.00999999977 : f32
    %91 = arith.addf %66, %cst_17 : f32
    %92 = vector.broadcast %91 : f32 to vector<4x128xf32>
    %93 = arith.cmpf ole, %83, %92 : vector<4x128xf32>
    %94 = arith.andi %90, %93 : vector<4x128xi1>
    %cst_18 = arith.constant 0.00999999977 : f32
    %95 = arith.subf %68, %cst_18 : f32
    %96 = vector.broadcast %95 : f32 to vector<4x128xf32>
    %97 = arith.cmpf oge, %83, %96 : vector<4x128xf32>
    %98 = arith.andi %94, %97 : vector<4x128xi1>
    %cst_19 = arith.constant 0.000000e+00 : f32
    %99 = vector.broadcast %cst_19 : f32 to vector<4x128xf32>
    %100 = arith.cmpf ogt, %81, %99 : vector<4x128xf32>
    %101 = arith.andi %98, %100 : vector<4x128xi1>
    %102 = arith.cmpf olt, %81, %52 : vector<4x128xf32>
    %103 = arith.andi %101, %102 : vector<4x128xi1>
    %104 = arith.select %103, %81, %52 : vector<4x128xi1>, vector<4x128xf32>
    %105 = vector.broadcast %56 : f32 to vector<4x128xf32>
    %106 = arith.select %103, %105, %53 : vector<4x128xi1>, vector<4x128xf32>
    %107 = vector.broadcast %58 : f32 to vector<4x128xf32>
    %108 = arith.select %103, %107, %54 : vector<4x128xi1>, vector<4x128xf32>
    %109 = arith.index_cast %arg1 : i32 to index
    %c14 = arith.constant 14 : index
    %110 = memref.load %arg2[%109, %c14] : memref<2x42xf32, #tpu.memory_space<smem>>
    %111 = arith.index_cast %arg1 : i32 to index
    %c15 = arith.constant 15 : index
    %112 = memref.load %arg2[%111, %c15] : memref<2x42xf32, #tpu.memory_space<smem>>
    %113 = arith.index_cast %arg1 : i32 to index
    %c16 = arith.constant 16 : index
    %114 = memref.load %arg2[%113, %c16] : memref<2x42xf32, #tpu.memory_space<smem>>
    %115 = arith.index_cast %arg1 : i32 to index
    %c17 = arith.constant 17 : index
    %116 = memref.load %arg2[%115, %c17] : memref<2x42xf32, #tpu.memory_space<smem>>
    %117 = arith.index_cast %arg1 : i32 to index
    %c18 = arith.constant 18 : index
    %118 = memref.load %arg2[%117, %c18] : memref<2x42xf32, #tpu.memory_space<smem>>
    %119 = arith.index_cast %arg1 : i32 to index
    %c19 = arith.constant 19 : index
    %120 = memref.load %arg2[%119, %c19] : memref<2x42xf32, #tpu.memory_space<smem>>
    %121 = arith.index_cast %arg1 : i32 to index
    %c20 = arith.constant 20 : index
    %122 = memref.load %arg2[%121, %c20] : memref<2x42xf32, #tpu.memory_space<smem>>
    %123 = vector.broadcast %110 : f32 to vector<4x128xf32>
    %124 = arith.mulf %1, %123 : vector<4x128xf32>
    %125 = vector.broadcast %112 : f32 to vector<4x128xf32>
    %126 = arith.mulf %3, %125 : vector<4x128xf32>
    %127 = arith.addf %124, %126 : vector<4x128xf32>
    %128 = tpu.reciprocal %127 {approx = true} : vector<4x128xf32> -> vector<4x128xf32>
    %129 = arith.mulf %127, %128 : vector<4x128xf32>
    %cst_20 = arith.constant 2.000000e+00 : f32
    %130 = vector.broadcast %cst_20 : f32 to vector<4x128xf32>
    %131 = arith.subf %130, %129 : vector<4x128xf32>
    %132 = arith.mulf %128, %131 : vector<4x128xf32>
    %cst_21 = arith.constant 0.000000e+00 : f32
    %133 = arith.subf %cst_21, %114 : f32
    %134 = vector.broadcast %133 : f32 to vector<4x128xf32>
    %135 = arith.mulf %134, %132 : vector<4x128xf32>
    %136 = arith.mulf %135, %1 : vector<4x128xf32>
    %137 = arith.mulf %135, %3 : vector<4x128xf32>
    %cst_22 = arith.constant 0.00999999977 : f32
    %138 = arith.addf %116, %cst_22 : f32
    %139 = vector.broadcast %138 : f32 to vector<4x128xf32>
    %140 = arith.cmpf ole, %136, %139 : vector<4x128xf32>
    %cst_23 = arith.constant 0.00999999977 : f32
    %141 = arith.subf %118, %cst_23 : f32
    %142 = vector.broadcast %141 : f32 to vector<4x128xf32>
    %143 = arith.cmpf oge, %136, %142 : vector<4x128xf32>
    %144 = arith.andi %140, %143 : vector<4x128xi1>
    %cst_24 = arith.constant 0.00999999977 : f32
    %145 = arith.addf %120, %cst_24 : f32
    %146 = vector.broadcast %145 : f32 to vector<4x128xf32>
    %147 = arith.cmpf ole, %137, %146 : vector<4x128xf32>
    %148 = arith.andi %144, %147 : vector<4x128xi1>
    %cst_25 = arith.constant 0.00999999977 : f32
    %149 = arith.subf %122, %cst_25 : f32
    %150 = vector.broadcast %149 : f32 to vector<4x128xf32>
    %151 = arith.cmpf oge, %137, %150 : vector<4x128xf32>
    %152 = arith.andi %148, %151 : vector<4x128xi1>
    %cst_26 = arith.constant 0.000000e+00 : f32
    %153 = vector.broadcast %cst_26 : f32 to vector<4x128xf32>
    %154 = arith.cmpf ogt, %135, %153 : vector<4x128xf32>
    %155 = arith.andi %152, %154 : vector<4x128xi1>
    %156 = arith.cmpf olt, %135, %104 : vector<4x128xf32>
    %157 = arith.andi %155, %156 : vector<4x128xi1>
    %158 = arith.select %157, %135, %104 : vector<4x128xi1>, vector<4x128xf32>
    %159 = vector.broadcast %110 : f32 to vector<4x128xf32>
    %160 = arith.select %157, %159, %106 : vector<4x128xi1>, vector<4x128xf32>
    %161 = vector.broadcast %112 : f32 to vector<4x128xf32>
    %162 = arith.select %157, %161, %108 : vector<4x128xi1>, vector<4x128xf32>
    %163 = arith.index_cast %arg1 : i32 to index
    %c21 = arith.constant 21 : index
    %164 = memref.load %arg2[%163, %c21] : memref<2x42xf32, #tpu.memory_space<smem>>
    %165 = arith.index_cast %arg1 : i32 to index
    %c22 = arith.constant 22 : index
    %166 = memref.load %arg2[%165, %c22] : memref<2x42xf32, #tpu.memory_space<smem>>
    %167 = arith.index_cast %arg1 : i32 to index
    %c23 = arith.constant 23 : index
    %168 = memref.load %arg2[%167, %c23] : memref<2x42xf32, #tpu.memory_space<smem>>
    %169 = arith.index_cast %arg1 : i32 to index
    %c24 = arith.constant 24 : index
    %170 = memref.load %arg2[%169, %c24] : memref<2x42xf32, #tpu.memory_space<smem>>
    %171 = arith.index_cast %arg1 : i32 to index
    %c25 = arith.constant 25 : index
    %172 = memref.load %arg2[%171, %c25] : memref<2x42xf32, #tpu.memory_space<smem>>
    %173 = arith.index_cast %arg1 : i32 to index
    %c26 = arith.constant 26 : index
    %174 = memref.load %arg2[%173, %c26] : memref<2x42xf32, #tpu.memory_space<smem>>
    %175 = arith.index_cast %arg1 : i32 to index
    %c27 = arith.constant 27 : index
    %176 = memref.load %arg2[%175, %c27] : memref<2x42xf32, #tpu.memory_space<smem>>
    %177 = vector.broadcast %164 : f32 to vector<4x128xf32>
    %178 = arith.mulf %1, %177 : vector<4x128xf32>
    %179 = vector.broadcast %166 : f32 to vector<4x128xf32>
    %180 = arith.mulf %3, %179 : vector<4x128xf32>
    %181 = arith.addf %178, %180 : vector<4x128xf32>
    %182 = tpu.reciprocal %181 {approx = true} : vector<4x128xf32> -> vector<4x128xf32>
    %183 = arith.mulf %181, %182 : vector<4x128xf32>
    %cst_27 = arith.constant 2.000000e+00 : f32
    %184 = vector.broadcast %cst_27 : f32 to vector<4x128xf32>
    %185 = arith.subf %184, %183 : vector<4x128xf32>
    %186 = arith.mulf %182, %185 : vector<4x128xf32>
    %cst_28 = arith.constant 0.000000e+00 : f32
    %187 = arith.subf %cst_28, %168 : f32
    %188 = vector.broadcast %187 : f32 to vector<4x128xf32>
    %189 = arith.mulf %188, %186 : vector<4x128xf32>
    %190 = arith.mulf %189, %1 : vector<4x128xf32>
    %191 = arith.mulf %189, %3 : vector<4x128xf32>
    %cst_29 = arith.constant 0.00999999977 : f32
    %192 = arith.addf %170, %cst_29 : f32
    %193 = vector.broadcast %192 : f32 to vector<4x128xf32>
    %194 = arith.cmpf ole, %190, %193 : vector<4x128xf32>
    %cst_30 = arith.constant 0.00999999977 : f32
    %195 = arith.subf %172, %cst_30 : f32
    %196 = vector.broadcast %195 : f32 to vector<4x128xf32>
    %197 = arith.cmpf oge, %190, %196 : vector<4x128xf32>
    %198 = arith.andi %194, %197 : vector<4x128xi1>
    %cst_31 = arith.constant 0.00999999977 : f32
    %199 = arith.addf %174, %cst_31 : f32
    %200 = vector.broadcast %199 : f32 to vector<4x128xf32>
    %201 = arith.cmpf ole, %191, %200 : vector<4x128xf32>
    %202 = arith.andi %198, %201 : vector<4x128xi1>
    %cst_32 = arith.constant 0.00999999977 : f32
    %203 = arith.subf %176, %cst_32 : f32
    %204 = vector.broadcast %203 : f32 to vector<4x128xf32>
    %205 = arith.cmpf oge, %191, %204 : vector<4x128xf32>
    %206 = arith.andi %202, %205 : vector<4x128xi1>
    %cst_33 = arith.constant 0.000000e+00 : f32
    %207 = vector.broadcast %cst_33 : f32 to vector<4x128xf32>
    %208 = arith.cmpf ogt, %189, %207 : vector<4x128xf32>
    %209 = arith.andi %206, %208 : vector<4x128xi1>
    %210 = arith.cmpf olt, %189, %158 : vector<4x128xf32>
    %211 = arith.andi %209, %210 : vector<4x128xi1>
    %212 = arith.select %211, %189, %158 : vector<4x128xi1>, vector<4x128xf32>
    %213 = vector.broadcast %164 : f32 to vector<4x128xf32>
    %214 = arith.select %211, %213, %160 : vector<4x128xi1>, vector<4x128xf32>
    %215 = vector.broadcast %166 : f32 to vector<4x128xf32>
    %216 = arith.select %211, %215, %162 : vector<4x128xi1>, vector<4x128xf32>
    %217 = arith.index_cast %arg1 : i32 to index
    %c28 = arith.constant 28 : index
    %218 = memref.load %arg2[%217, %c28] : memref<2x42xf32, #tpu.memory_space<smem>>
    %219 = arith.index_cast %arg1 : i32 to index
    %c29 = arith.constant 29 : index
    %220 = memref.load %arg2[%219, %c29] : memref<2x42xf32, #tpu.memory_space<smem>>
    %221 = arith.index_cast %arg1 : i32 to index
    %c30 = arith.constant 30 : index
    %222 = memref.load %arg2[%221, %c30] : memref<2x42xf32, #tpu.memory_space<smem>>
    %223 = arith.index_cast %arg1 : i32 to index
    %c31 = arith.constant 31 : index
    %224 = memref.load %arg2[%223, %c31] : memref<2x42xf32, #tpu.memory_space<smem>>
    %225 = arith.index_cast %arg1 : i32 to index
    %c32 = arith.constant 32 : index
    %226 = memref.load %arg2[%225, %c32] : memref<2x42xf32, #tpu.memory_space<smem>>
    %227 = arith.index_cast %arg1 : i32 to index
    %c33 = arith.constant 33 : index
    %228 = memref.load %arg2[%227, %c33] : memref<2x42xf32, #tpu.memory_space<smem>>
    %229 = arith.index_cast %arg1 : i32 to index
    %c34 = arith.constant 34 : index
    %230 = memref.load %arg2[%229, %c34] : memref<2x42xf32, #tpu.memory_space<smem>>
    %231 = vector.broadcast %218 : f32 to vector<4x128xf32>
    %232 = arith.mulf %1, %231 : vector<4x128xf32>
    %233 = vector.broadcast %220 : f32 to vector<4x128xf32>
    %234 = arith.mulf %3, %233 : vector<4x128xf32>
    %235 = arith.addf %232, %234 : vector<4x128xf32>
    %236 = tpu.reciprocal %235 {approx = true} : vector<4x128xf32> -> vector<4x128xf32>
    %237 = arith.mulf %235, %236 : vector<4x128xf32>
    %cst_34 = arith.constant 2.000000e+00 : f32
    %238 = vector.broadcast %cst_34 : f32 to vector<4x128xf32>
    %239 = arith.subf %238, %237 : vector<4x128xf32>
    %240 = arith.mulf %236, %239 : vector<4x128xf32>
    %cst_35 = arith.constant 0.000000e+00 : f32
    %241 = arith.subf %cst_35, %222 : f32
    %242 = vector.broadcast %241 : f32 to vector<4x128xf32>
    %243 = arith.mulf %242, %240 : vector<4x128xf32>
    %244 = arith.mulf %243, %1 : vector<4x128xf32>
    %245 = arith.mulf %243, %3 : vector<4x128xf32>
    %cst_36 = arith.constant 0.00999999977 : f32
    %246 = arith.addf %224, %cst_36 : f32
    %247 = vector.broadcast %246 : f32 to vector<4x128xf32>
    %248 = arith.cmpf ole, %244, %247 : vector<4x128xf32>
    %cst_37 = arith.constant 0.00999999977 : f32
    %249 = arith.subf %226, %cst_37 : f32
    %250 = vector.broadcast %249 : f32 to vector<4x128xf32>
    %251 = arith.cmpf oge, %244, %250 : vector<4x128xf32>
    %252 = arith.andi %248, %251 : vector<4x128xi1>
    %cst_38 = arith.constant 0.00999999977 : f32
    %253 = arith.addf %228, %cst_38 : f32
    %254 = vector.broadcast %253 : f32 to vector<4x128xf32>
    %255 = arith.cmpf ole, %245, %254 : vector<4x128xf32>
    %256 = arith.andi %252, %255 : vector<4x128xi1>
    %cst_39 = arith.constant 0.00999999977 : f32
    %257 = arith.subf %230, %cst_39 : f32
    %258 = vector.broadcast %257 : f32 to vector<4x128xf32>
    %259 = arith.cmpf oge, %245, %258 : vector<4x128xf32>
    %260 = arith.andi %256, %259 : vector<4x128xi1>
    %cst_40 = arith.constant 0.000000e+00 : f32
    %261 = vector.broadcast %cst_40 : f32 to vector<4x128xf32>
    %262 = arith.cmpf ogt, %243, %261 : vector<4x128xf32>
    %263 = arith.andi %260, %262 : vector<4x128xi1>
    %264 = arith.cmpf olt, %243, %212 : vector<4x128xf32>
    %265 = arith.andi %263, %264 : vector<4x128xi1>
    %266 = arith.select %265, %243, %212 : vector<4x128xi1>, vector<4x128xf32>
    %267 = vector.broadcast %218 : f32 to vector<4x128xf32>
    %268 = arith.select %265, %267, %214 : vector<4x128xi1>, vector<4x128xf32>
    %269 = vector.broadcast %220 : f32 to vector<4x128xf32>
    %270 = arith.select %265, %269, %216 : vector<4x128xi1>, vector<4x128xf32>
    %271 = arith.index_cast %arg1 : i32 to index
    %c35 = arith.constant 35 : index
    %272 = memref.load %arg2[%271, %c35] : memref<2x42xf32, #tpu.memory_space<smem>>
    %273 = arith.index_cast %arg1 : i32 to index
    %c36 = arith.constant 36 : index
    %274 = memref.load %arg2[%273, %c36] : memref<2x42xf32, #tpu.memory_space<smem>>
    %275 = arith.index_cast %arg1 : i32 to index
    %c37 = arith.constant 37 : index
    %276 = memref.load %arg2[%275, %c37] : memref<2x42xf32, #tpu.memory_space<smem>>
    %277 = arith.index_cast %arg1 : i32 to index
    %c38 = arith.constant 38 : index
    %278 = memref.load %arg2[%277, %c38] : memref<2x42xf32, #tpu.memory_space<smem>>
    %279 = arith.index_cast %arg1 : i32 to index
    %c39 = arith.constant 39 : index
    %280 = memref.load %arg2[%279, %c39] : memref<2x42xf32, #tpu.memory_space<smem>>
    %281 = arith.index_cast %arg1 : i32 to index
    %c40 = arith.constant 40 : index
    %282 = memref.load %arg2[%281, %c40] : memref<2x42xf32, #tpu.memory_space<smem>>
    %283 = arith.index_cast %arg1 : i32 to index
    %c41 = arith.constant 41 : index
    %284 = memref.load %arg2[%283, %c41] : memref<2x42xf32, #tpu.memory_space<smem>>
    %285 = vector.broadcast %272 : f32 to vector<4x128xf32>
    %286 = arith.mulf %1, %285 : vector<4x128xf32>
    %287 = vector.broadcast %274 : f32 to vector<4x128xf32>
    %288 = arith.mulf %3, %287 : vector<4x128xf32>
    %289 = arith.addf %286, %288 : vector<4x128xf32>
    %290 = tpu.reciprocal %289 {approx = true} : vector<4x128xf32> -> vector<4x128xf32>
    %291 = arith.mulf %289, %290 : vector<4x128xf32>
    %cst_41 = arith.constant 2.000000e+00 : f32
    %292 = vector.broadcast %cst_41 : f32 to vector<4x128xf32>
    %293 = arith.subf %292, %291 : vector<4x128xf32>
    %294 = arith.mulf %290, %293 : vector<4x128xf32>
    %cst_42 = arith.constant 0.000000e+00 : f32
    %295 = arith.subf %cst_42, %276 : f32
    %296 = vector.broadcast %295 : f32 to vector<4x128xf32>
    %297 = arith.mulf %296, %294 : vector<4x128xf32>
    %298 = arith.mulf %297, %1 : vector<4x128xf32>
    %299 = arith.mulf %297, %3 : vector<4x128xf32>
    %cst_43 = arith.constant 0.00999999977 : f32
    %300 = arith.addf %278, %cst_43 : f32
    %301 = vector.broadcast %300 : f32 to vector<4x128xf32>
    %302 = arith.cmpf ole, %298, %301 : vector<4x128xf32>
    %cst_44 = arith.constant 0.00999999977 : f32
    %303 = arith.subf %280, %cst_44 : f32
    %304 = vector.broadcast %303 : f32 to vector<4x128xf32>
    %305 = arith.cmpf oge, %298, %304 : vector<4x128xf32>
    %306 = arith.andi %302, %305 : vector<4x128xi1>
    %cst_45 = arith.constant 0.00999999977 : f32
    %307 = arith.addf %282, %cst_45 : f32
    %308 = vector.broadcast %307 : f32 to vector<4x128xf32>
    %309 = arith.cmpf ole, %299, %308 : vector<4x128xf32>
    %310 = arith.andi %306, %309 : vector<4x128xi1>
    %cst_46 = arith.constant 0.00999999977 : f32
    %311 = arith.subf %284, %cst_46 : f32
    %312 = vector.broadcast %311 : f32 to vector<4x128xf32>
    %313 = arith.cmpf oge, %299, %312 : vector<4x128xf32>
    %314 = arith.andi %310, %313 : vector<4x128xi1>
    %cst_47 = arith.constant 0.000000e+00 : f32
    %315 = vector.broadcast %cst_47 : f32 to vector<4x128xf32>
    %316 = arith.cmpf ogt, %297, %315 : vector<4x128xf32>
    %317 = arith.andi %314, %316 : vector<4x128xi1>
    %318 = arith.cmpf olt, %297, %266 : vector<4x128xf32>
    %319 = arith.andi %317, %318 : vector<4x128xi1>
    %320 = arith.select %319, %297, %266 : vector<4x128xi1>, vector<4x128xf32>
    %321 = vector.broadcast %272 : f32 to vector<4x128xf32>
    %322 = arith.select %319, %321, %268 : vector<4x128xi1>, vector<4x128xf32>
    %323 = vector.broadcast %274 : f32 to vector<4x128xf32>
    %324 = arith.select %319, %323, %270 : vector<4x128xi1>, vector<4x128xf32>
    %c0_48 = arith.constant 0 : index
    %c0_49 = arith.constant 0 : index
    %c0_50 = arith.constant 0 : index
    %325 = vector.load %arg4[%c0_48, %c0_49, %c0_50] : memref<1x4x128xf32, #tpu.memory_space<vmem>>, vector<1x4x128xf32>
    %326 = vector.shape_cast %325 : vector<1x4x128xf32> to vector<4x128xf32>
    %327 = vector.shape_cast %320 : vector<4x128xf32> to vector<1x4x128xf32>
    tpu.vector_store %arg4[%c0_48, %c0_49, %c0_50], %327 {strides = array<i32>} : memref<1x4x128xf32, #tpu.memory_space<vmem>>, vector<1x4x128xf32>,
    %c0_51 = arith.constant 0 : index
    %c0_52 = arith.constant 0 : index
    %c0_53 = arith.constant 0 : index
    %c0_54 = arith.constant 0 : index
    %328 = vector.load %arg5[%c0_51, %c0_52, %c0_53, %c0_54] : memref<1x2x4x128xf32, #tpu.memory_space<vmem>>, vector<1x1x4x128xf32>
    %329 = vector.shape_cast %328 : vector<1x1x4x128xf32> to vector<4x128xf32>
    %330 = vector.shape_cast %322 : vector<4x128xf32> to vector<1x1x4x128xf32>
    tpu.vector_store %arg5[%c0_51, %c0_52, %c0_53, %c0_54], %330 {strides = array<i32>} : memref<1x2x4x128xf32, #tpu.memory_space<vmem>>, vector<1x1x4x128xf32>,
    %c0_55 = arith.constant 0 : index
    %c1_56 = arith.constant 1 : index
    %c0_57 = arith.constant 0 : index
    %c0_58 = arith.constant 0 : index
    %331 = vector.load %arg5[%c0_55, %c1_56, %c0_57, %c0_58] : memref<1x2x4x128xf32, #tpu.memory_space<vmem>>, vector<1x1x4x128xf32>
    %332 = vector.shape_cast %331 : vector<1x1x4x128xf32> to vector<4x128xf32>
    %333 = vector.shape_cast %324 : vector<4x128xf32> to vector<1x1x4x128xf32>
    tpu.vector_store %arg5[%c0_55, %c1_56, %c0_57, %c0_58], %333 {strides = array<i32>} : memref<1x2x4x128xf32, #tpu.memory_space<vmem>>, vector<1x1x4x128xf32>,
    return
  }
  func.func @transform_0(%arg0: i32, %arg1: i32) -> (i32, i32) {
    %c0_i32 = arith.constant 0 : i32
    %c0_i32_0 = arith.constant 0 : i32
    %c0_i32_1 = arith.constant 0 : i32
    return %c0_i32, %c0_i32_0 : i32, i32
  }
  func.func @transform_1(%arg0: i32, %arg1: i32) -> (i32, i32, i32) {
    %c0_i32 = arith.constant 0 : i32
    %c0_i32_0 = arith.constant 0 : i32
    %c0_i32_1 = arith.constant 0 : i32
    return %c0_i32, %arg0, %c0_i32_0 : i32, i32, i32
  }
  func.func @transform_2(%arg0: i32, %arg1: i32) -> (i32, i32, i32) {
    %c0_i32 = arith.constant 0 : i32
    %c0_i32_0 = arith.constant 0 : i32
    return %arg1, %arg0, %c0_i32 : i32, i32, i32
  }
  func.func @transform_3(%arg0: i32, %arg1: i32) -> (i32, i32, i32, i32) {
    %c0_i32 = arith.constant 0 : i32
    %c0_i32_0 = arith.constant 0 : i32
    %c0_i32_1 = arith.constant 0 : i32
    return %arg1, %c0_i32, %arg0, %c0_i32_0 : i32, i32, i32, i32
  }
}

</mosaic_0001>

<llo_original>
// kernel: tpu_custom_call.1
$region0: #{tpu_custom_call.1}
  #allocation0 [shape = 'u32[]', space=smem, size = 0x4, offset = 0x4, fixed_abs, tag = 'smem constant byte address 0x4 - core index']
  #allocation1 [shape = 'u32[144,128]{1,0:T(1,128)}', space=vmem, size = 0x12000, scoped, tag = 'internal scratch']
  %s0 = inlined_call_operand.hbm [shape: f32[2,42], index: 0, kind: input, shape index: {}]
  %s1 = inlined_call_operand.hbm [shape: f32[2,4,128], index: 1, kind: input, shape index: {}]
  %s2 = inlined_call_operand.hbm [shape: f32[2,4,128], index: 2, kind: output, shape index: {0}]
  %s3 = inlined_call_operand.hbm [shape: f32[2,2,4,128], index: 3, kind: output, shape index: {1}]
  %4 = xla_tuple %s2, %s3
  %s5 = sld [smem:[#allocation0]]
  $region57: #{tpu_custom_call.1} parent=0
    _
  %s7 = ssub.s32 1, %s5
  %s8 = scalar_select 0, %s7, %s5
  $region1: #{tpu_custom_call.1} parent=0
    #allocation2 [shape = 'u8[1024]{0}', space=smem, size = 0x400, scoped, tag = 'input window, operand 0, single buffered']
    #allocation3 [shape = 's32[2]{0}', space=sflag, size = 0x8, scoped, tag = 'scoped memory for tpu_custom_call.1']
    #allocation4 [shape = 's32[2]{0}', space=sflag, size = 0x8, scoped, tag = 'scoped memory for tpu_custom_call.1']
    #allocation5 [shape = 's32[2]{0}', space=sflag, size = 0x8, scoped, tag = 'scoped memory for tpu_custom_call.1']
    #allocation6 [shape = 'u8[4096]{0}', space=vmem, size = 0x1000, scoped, tag = 'input window, operand 1, single buffered']
    #allocation7 [shape = 'u8[4096]{0}', space=vmem, size = 0x1000, scoped, tag = 'output window, operand 0']
    #allocation8 [shape = 'u8[8192]{0}', space=vmem, size = 0x2000, scoped, tag = 'output window, operand 1']
    #allocation9 [shape = 's32[2]{0}', space=sflag, size = 0x8, scoped, tag = 'scoped memory for tpu_custom_call.1']
    %9 = vsyncpa [#allocation5], 0
    %10 = vsyncpa [#allocation3], 0
    %11 = vsyncpa [#allocation4], 0
    %s12 = scalar_lea.sflag [#allocation4], 1
    %13 = vsyncpa %s12, 0
    %14 = vsyncpa [#allocation9], 0
    %s15 = scalar_lea.sflag [#allocation9], 1
    %16 = vsyncpa %s15, 0
    loop: start=0, step=1, limit=4
    $region2: #{tpu_custom_call.1} parent=1 // loop_pre_header
      _
    $region3: #{tpu_custom_call.1} parent=1 // loop_header
      %s18 = sphi 0, %s22
      %p19 = scmp.ge.s32.totalorder %s18, 4
      %s25 = sphi 0, %s37
      %s26 = sphi 0, %s33
      %s27 = sphi 0, %s25
      %s28 = sphi 0, %s26
      %s29 = sphi 0, %s27
      %s30 = sphi 0, %s28
      %s38 = sphi 0, %s38
      %s40 = sphi 0, %s38
      %s41 = sphi 0, %s40
      %s55 = sphi 0, %s41
      %s61 = sphi 0, %s63
      %s64 = sphi 0, %s61
      %s65 = sphi 0, %s64
      %s81 = sphi 0, %s65
      %s89 = sphi 0, %s91
      %s92 = sphi 0, %s89
      %s93 = sphi 0, %s92
      %s109 = sphi 0, %s93
      %s117 = sphi 0, %s119
      %s120 = sphi 0, %s117
      %s121 = sphi 0, %s120
      %s137 = sphi 0, %s121
    $region4: #{tpu_custom_call.1} parent=1 // loop_header_branch
      %21 = sbr.rel (%p19) target = $region8
    $region5: #{tpu_custom_call.1} parent=1 // loop_body
      %s23 = ssub.s32 %s18, 1
      %s24 = ssub.s32 %s18, 2
      %s31 = sadd.s32 1, %s26
      %p32 = scmp.ge.s32.totalorder %s31, 2
      %s33 = scalar_select %p32, 0, %s31
      %s34 = sadd.s32 1, %s25
      %s35 = scalar_select %p32, %s34, %s25
      %p36 = scmp.ge.s32.totalorder %s35, 1
      %s37 = scalar_select %p36, 0, %s35
      %s39 = sadd.s32 %s38, 1
      %p42 = scmp.eq.s32.totalorder %s18, 1
      %p43 = scmp.ne.s32.totalorder %s38, %s40
      %p44 = scmp.eq.s32.totalorder %s18, 0
      %p45 = por %p43, %p44
      %p46 = scmp.ne.s32.totalorder %s38, %s40
      %p47 = scmp.eq.s32.totalorder %s23, 1
      %p48 = por %p46, %p47
      %p49 = scmp.ne.s32.totalorder %s40, %s41
      %p50 = scmp.eq.s32.totalorder %s23, 0
      %p51 = por %p49, %p50
      %p52 = scmp.ne.s32.totalorder %s40, %s41
      %p53 = scmp.eq.s32.totalorder %s24, 1
      %p54 = por %p52, %p53
      %p56 = scmp.ne.s32.totalorder %s41, %s55
      %p57 = scmp.eq.s32.totalorder %s24, 0
      %p58 = por %p56, %p57
      %s59 = ssub.s32 %s25, %s37
      %p60 = scmp.eq.s32.totalorder %s59, 0
      %s62 = sadd.s32 %s61, 1
      %s63 = scalar_select %p60, %s61, %s62
      %p66 = pneg %p60
      %p67 = scmp.eq.s32.totalorder %s18, 1
      %p68 = por %p66, %p67
      %p69 = scmp.ne.s32.totalorder %s61, %s64
      %p70 = scmp.eq.s32.totalorder %s18, 0
      %p71 = por %p69, %p70
      %p72 = scmp.ne.s32.totalorder %s61, %s64
      %p73 = scmp.eq.s32.totalorder %s23, 1
      %p74 = por %p72, %p73
      %p75 = scmp.ne.s32.totalorder %s64, %s65
      %p76 = scmp.eq.s32.totalorder %s23, 0
      %p77 = por %p75, %p76
      %p78 = scmp.ne.s32.totalorder %s64, %s65
      %p79 = scmp.eq.s32.totalorder %s24, 1
      %p80 = por %p78, %p79
      %p82 = scmp.ne.s32.totalorder %s65, %s81
      %p83 = scmp.eq.s32.totalorder %s24, 0
      %p84 = por %p82, %p83
      %s85 = ssub.s32 %s26, %s33
      %s86 = ssub.s32 %s25, %s37
      %s87 = sor.u32 %s85, %s86
      %p88 = scmp.eq.s32.totalorder %s87, 0
      %s90 = sadd.s32 %s89, 1
      %s91 = scalar_select %p88, %s89, %s90
      %p94 = pneg %p88
      %p95 = scmp.eq.s32.totalorder %s18, 1
      %p96 = por %p94, %p95
      %p97 = scmp.ne.s32.totalorder %s89, %s92
      %p98 = scmp.eq.s32.totalorder %s18, 0
      %p99 = por %p97, %p98
      %p100 = scmp.ne.s32.totalorder %s89, %s92
      %p101 = scmp.eq.s32.totalorder %s23, 1
      %p102 = por %p100, %p101
      %p103 = scmp.ne.s32.totalorder %s92, %s93
      %p104 = scmp.eq.s32.totalorder %s23, 0
      %p105 = por %p103, %p104
      %p106 = scmp.ne.s32.totalorder %s92, %s93
      %p107 = scmp.eq.s32.totalorder %s24, 1
      %p108 = por %p106, %p107
      %p110 = scmp.ne.s32.totalorder %s93, %s109
      %p111 = scmp.eq.s32.totalorder %s24, 0
      %p112 = por %p110, %p111
      %s113 = ssub.s32 %s26, %s33
      %s114 = ssub.s32 %s25, %s37
      %s115 = sor.u32 %s113, %s114
      %p116 = scmp.eq.s32.totalorder %s115, 0
      %s118 = sadd.s32 %s117, 1
      %s119 = scalar_select %p116, %s117, %s118
      %p122 = pneg %p116
      %p123 = scmp.eq.s32.totalorder %s18, 1
      %p124 = por %p122, %p123
      %p125 = scmp.ne.s32.totalorder %s117, %s120
      %p126 = scmp.eq.s32.totalorder %s18, 0
      %p127 = por %p125, %p126
      %p128 = scmp.ne.s32.totalorder %s117, %s120
      %p129 = scmp.eq.s32.totalorder %s23, 1
      %p130 = por %p128, %p129
      %p131 = scmp.ne.s32.totalorder %s120, %s121
      %p132 = scmp.eq.s32.totalorder %s23, 0
      %p133 = por %p131, %p132
      %p134 = scmp.ne.s32.totalorder %s120, %s121
      %p135 = scmp.eq.s32.totalorder %s24, 1
      %p136 = por %p134, %p135
      %p138 = scmp.ne.s32.totalorder %s121, %s137
      %p139 = scmp.eq.s32.totalorder %s24, 0
      %p140 = por %p138, %p139
      %p141 = scmp.le.s32.totalorder 1, %s18
      %p142 = scmp.lt.s32.totalorder %s18, 3
      %p143 = pnand %p141, %p142
      %p144 = pneg %p143
      // Predicated region
      $region9: #{tpu_custom_call.1} parent=5 // pred_check
        _
      $region10: #{tpu_custom_call.1} parent=5 // pred_check_branch
        %146 = sbr.rel (%p143) target = $region12
      $region11: #{tpu_custom_call.1} parent=5 // pred_region
        %s147 = ssub.s32 %s18, 1
        // Predicated region
        $region13: #{tpu_custom_call.1} parent=11 // pred_check
          %p148 = pneg %p51
        $region14: #{tpu_custom_call.1} parent=11 // pred_check_branch
          %150 = sbr.rel (%p148) target = $region16
        $region15: #{tpu_custom_call.1} parent=11 // pred_region
          %s152 = ssub.s32 32, 32
          %153 = vsyncadd [#allocation5], %s152
          %156 = dma.hbm_to_smem %s0, 32, [#allocation2], [#allocation5]
        $region16: #{tpu_custom_call.1} parent=11 // pred_fallthru
          _
        // Predicated region
        $region17: #{tpu_custom_call.1} parent=11 // pred_check
          %p157 = pneg %p77
        $region18: #{tpu_custom_call.1} parent=11 // pred_check_branch
          %159 = sbr.rel (%p157) target = $region20
        $region19: #{tpu_custom_call.1} parent=11 // pred_region
          %s161 = ssub.s32 128, 128
          %162 = vsyncadd [#allocation3], %s161
          %s163 = smul.addr %s27, 64
          %s164 = scalar_lea.hbm %s1, %s163
          %s165 = sshll.u32 [#allocation6], 4
          %s166 = int_to_ptr.vmem [resolvable:$true] %s165
          %171 = dma.hbm_to_vmem [thread:$0]  %s164, 128, %s166, [#allocation3], 64, 64, 4
        $region20: #{tpu_custom_call.1} parent=11 // pred_fallthru
          _
      $region12: #{tpu_custom_call.1} parent=5 // pred_fallthru
        _
      %p172 = scmp.lt.s32.totalorder %s18, 2
      // Predicated region
      $region21: #{tpu_custom_call.1} parent=5 // pred_check
        %p173 = pneg %p172
      $region22: #{tpu_custom_call.1} parent=5 // pred_check_branch
        %175 = sbr.rel (%p173) target = $region24
      $region23: #{tpu_custom_call.1} parent=5 // pred_region
        _
      $region24: #{tpu_custom_call.1} parent=5 // pred_fallthru
        _
      %p176 = scmp.le.s32.totalorder 1, %s18
      %p177 = scmp.lt.s32.totalorder %s18, 3
      %p178 = pnand %p176, %p177
      %p179 = pneg %p178
      // Predicated region
      $region25: #{tpu_custom_call.1} parent=5 // pred_check
        _
      $region26: #{tpu_custom_call.1} parent=5 // pred_check_branch
        %181 = sbr.rel (%p178) target = $region28
      $region27: #{tpu_custom_call.1} parent=5 // pred_region
        %s182 = ssub.s32 %s18, 1
        // Predicated region
        $region29: #{tpu_custom_call.1} parent=27 // pred_check
          %p183 = pneg %p51
        $region30: #{tpu_custom_call.1} parent=27 // pred_check_branch
          %185 = sbr.rel (%p183) target = $region32
        $region31: #{tpu_custom_call.1} parent=27 // pred_region
          %186 = dma.done [#allocation5], 32
        $region32: #{tpu_custom_call.1} parent=27 // pred_fallthru
          _
        // Predicated region
        $region33: #{tpu_custom_call.1} parent=27 // pred_check
          %p187 = pneg %p77
        $region34: #{tpu_custom_call.1} parent=27 // pred_check_branch
          %189 = sbr.rel (%p187) target = $region36
        $region35: #{tpu_custom_call.1} parent=27 // pred_region
          %190 = dma.done [#allocation3], 128
        $region36: #{tpu_custom_call.1} parent=27 // pred_fallthru
          _
        %191 = sfence
        %p192 = pneg %p51
        %p193 = pneg %p48
        %p194 = pneg %p77
        %p195 = pneg %p74
        %p196 = pneg %p105
        %p197 = pneg %p102
        %s198 = sand.u32 %s92, 1
        %s199 = scalar_lea.sflag [#allocation4], %s198
        %s200 = sand.u32 %s92, 1
        %s201 = smul.addr %s200, 4
        %s202 = scalar_lea.vmem [#allocation7], %s201
        %p203 = pneg %p133
        %p204 = pneg %p130
        %s205 = sand.u32 %s120, 1
        %s206 = scalar_lea.sflag [#allocation9], %s205
        %s207 = sand.u32 %s120, 1
        %s208 = smul.addr %s207, 8
        %s209 = scalar_lea.vmem [#allocation8], %s208
        %v210 = vld [vmem:[#allocation6] sm:$0xf]
        %s211 = scalar_lea.vmem [#allocation6], 4
        %v212 = vld [vmem:[%s211] sm:$0xf]
        %s213 = smul.u32 %s28, 128
        %s214 = sld [smem:[#allocation2 + %s213]]
        %s215 = sadd.s32 %s213, 1
        %s216 = sld [smem:[#allocation2 + %s215]]
        %s217 = sadd.s32 %s213, 2
        %s218 = sld [smem:[#allocation2 + %s217]]
        %s219 = sadd.s32 %s213, 3
        %s220 = sld [smem:[#allocation2 + %s219]]
        %s221 = sadd.s32 %s213, 4
        %s222 = sld [smem:[#allocation2 + %s221]]
        %s223 = sadd.s32 %s213, 5
        %s224 = sld [smem:[#allocation2 + %s223]]
        %s225 = sadd.s32 %s213, 6
        %s226 = sld [smem:[#allocation2 + %s225]]
        %v227 = vstv %s214
        %v228 = vmul.f32 %v210, %v227
        %v229 = vstv %s216
        %v230 = vmul.f32 %v212, %v229
        %v231 = vadd.f32 %v228, %v230
        %v232 = vrcp.pop %v231
        %v233 = vmul.f32 %v231, %v232
        %v234 = vsub.f32 2.0, %v233
        %v235 = vmul.f32 %v232, %v234
        %s236 = ssub.f32 0.0, %s218
        %v237 = vstv %s236
        %v238 = vmul.f32 %v237, %v235
        %v239 = vmul.f32 %v238, %v210
        %v240 = vmul.f32 %v238, %v212
        %s241 = sadd.f32 %s220, 0.01
        %v242 = vstv %s241
        %vm243 = vcmp.le.f32.partialorder %v239, %v242
        %s244 = ssub.f32 %s222, 0.01
        %v245 = vstv %s244
        %vm246 = vcmp.ge.f32.partialorder %v239, %v245
        %vm247 = vmand %vm243, %vm246
        %s248 = sadd.f32 %s224, 0.01
        %v249 = vstv %s248
        %vm250 = vcmp.le.f32.partialorder %v240, %v249
        %vm251 = vmand %vm247, %vm250
        %s252 = ssub.f32 %s226, 0.01
        %v253 = vstv %s252
        %vm254 = vcmp.ge.f32.partialorder %v240, %v253
        %vm255 = vmand %vm251, %vm254
        %vm256 = vcmp.gt.f32.partialorder %v238, 0.0
        %vm257 = vmand %vm255, %vm256
        %v258 = vsel %vm257, %v238, inf
        %s259 = sadd.s32 %s213, 7
        %s260 = sld [smem:[#allocation2 + %s259]]
        %s261 = sadd.s32 %s213, 8
        %s262 = sld [smem:[#allocation2 + %s261]]
        %s263 = sadd.s32 %s213, 9
        %s264 = sld [smem:[#allocation2 + %s263]]
        %s265 = sadd.s32 %s213, 10
        %s266 = sld [smem:[#allocation2 + %s265]]
        %s267 = sadd.s32 %s213, 11
        %s268 = sld [smem:[#allocation2 + %s267]]
        %s269 = sadd.s32 %s213, 12
        %s270 = sld [smem:[#allocation2 + %s269]]
        %s271 = sadd.s32 %s213, 13
        %s272 = sld [smem:[#allocation2 + %s271]]
        %v273 = vstv %s260
        %v274 = vmul.f32 %v210, %v273
        %v275 = vstv %s262
        %v276 = vmul.f32 %v212, %v275
        %v277 = vadd.f32 %v274, %v276
        %v278 = vrcp.pop %v277
        %v279 = vmul.f32 %v277, %v278
        %v280 = vsub.f32 2.0, %v279
        %v281 = vmul.f32 %v278, %v280
        %s282 = ssub.f32 0.0, %s264
        %v283 = vstv %s282
        %v284 = vmul.f32 %v283, %v281
        %v285 = vmul.f32 %v284, %v210
        %v286 = vmul.f32 %v284, %v212
        %s287 = sadd.f32 %s266, 0.01
        %v288 = vstv %s287
        %vm289 = vcmp.le.f32.partialorder %v285, %v288
        %s290 = ssub.f32 %s268, 0.01
        %v291 = vstv %s290
        %vm292 = vcmp.ge.f32.partialorder %v285, %v291
        %vm293 = vmand %vm289, %vm292
        %s294 = sadd.f32 %s270, 0.01
        %v295 = vstv %s294
        %vm296 = vcmp.le.f32.partialorder %v286, %v295
        %vm297 = vmand %vm293, %vm296
        %s298 = ssub.f32 %s272, 0.01
        %v299 = vstv %s298
        %vm300 = vcmp.ge.f32.partialorder %v286, %v299
        %vm301 = vmand %vm297, %vm300
        %vm302 = vcmp.gt.f32.partialorder %v284, 0.0
        %vm303 = vmand %vm301, %vm302
        %vm304 = vcmp.lt.f32.partialorder %v284, %v258
        %vm305 = vmand %vm303, %vm304
        %v306 = vsel %vm305, %v284, %v258
        %v307 = vsel %vm305, %v273, %v227
        %v308 = vsel %vm305, %v275, %v229
        %s309 = sadd.s32 %s213, 14
        %s310 = sld [smem:[#allocation2 + %s309]]
        %s311 = sadd.s32 %s213, 15
        %s312 = sld [smem:[#allocation2 + %s311]]
        %s313 = sadd.s32 %s213, 16
        %s314 = sld [smem:[#allocation2 + %s313]]
        %s315 = sadd.s32 %s213, 17
        %s316 = sld [smem:[#allocation2 + %s315]]
        %s317 = sadd.s32 %s213, 18
        %s318 = sld [smem:[#allocation2 + %s317]]
        %s319 = sadd.s32 %s213, 19
        %s320 = sld [smem:[#allocation2 + %s319]]
        %s321 = sadd.s32 %s213, 20
        %s322 = sld [smem:[#allocation2 + %s321]]
        %v323 = vstv %s310
        %v324 = vmul.f32 %v210, %v323
        %v325 = vstv %s312
        %v326 = vmul.f32 %v212, %v325
        %v327 = vadd.f32 %v324, %v326
        %v328 = vrcp.pop %v327
        %v329 = vmul.f32 %v327, %v328
        %v330 = vsub.f32 2.0, %v329
        %v331 = vmul.f32 %v328, %v330
        %s332 = ssub.f32 0.0, %s314
        %v333 = vstv %s332
        %v334 = vmul.f32 %v333, %v331
        %v335 = vmul.f32 %v334, %v210
        %v336 = vmul.f32 %v334, %v212
        %s337 = sadd.f32 %s316, 0.01
        %v338 = vstv %s337
        %vm339 = vcmp.le.f32.partialorder %v335, %v338
        %s340 = ssub.f32 %s318, 0.01
        %v341 = vstv %s340
        %vm342 = vcmp.ge.f32.partialorder %v335, %v341
        %vm343 = vmand %vm339, %vm342
        %s344 = sadd.f32 %s320, 0.01
        %v345 = vstv %s344
        %vm346 = vcmp.le.f32.partialorder %v336, %v345
        %vm347 = vmand %vm343, %vm346
        %s348 = ssub.f32 %s322, 0.01
        %v349 = vstv %s348
        %vm350 = vcmp.ge.f32.partialorder %v336, %v349
        %vm351 = vmand %vm347, %vm350
        %vm352 = vcmp.gt.f32.partialorder %v334, 0.0
        %vm353 = vmand %vm351, %vm352
        %vm354 = vcmp.lt.f32.partialorder %v334, %v306
        %vm355 = vmand %vm353, %vm354
        %v356 = vsel %vm355, %v334, %v306
        %v357 = vsel %vm355, %v323, %v307
        %v358 = vsel %vm355, %v325, %v308
        %s359 = sadd.s32 %s213, 21
        %s360 = sld [smem:[#allocation2 + %s359]]
        %s361 = sadd.s32 %s213, 22
        %s362 = sld [smem:[#allocation2 + %s361]]
        %s363 = sadd.s32 %s213, 23
        %s364 = sld [smem:[#allocation2 + %s363]]
        %s365 = sadd.s32 %s213, 24
        %s366 = sld [smem:[#allocation2 + %s365]]
        %s367 = sadd.s32 %s213, 25
        %s368 = sld [smem:[#allocation2 + %s367]]
        %s369 = sadd.s32 %s213, 26
        %s370 = sld [smem:[#allocation2 + %s369]]
        %s371 = sadd.s32 %s213, 27
        %s372 = sld [smem:[#allocation2 + %s371]]
        %v373 = vstv %s360
        %v374 = vmul.f32 %v210, %v373
        %v375 = vstv %s362
        %v376 = vmul.f32 %v212, %v375
        %v377 = vadd.f32 %v374, %v376
        %v378 = vrcp.pop %v377
        %v379 = vmul.f32 %v377, %v378
        %v380 = vsub.f32 2.0, %v379
        %v381 = vmul.f32 %v378, %v380
        %s382 = ssub.f32 0.0, %s364
        %v383 = vstv %s382
        %v384 = vmul.f32 %v383, %v381
        %v385 = vmul.f32 %v384, %v210
        %v386 = vmul.f32 %v384, %v212
        %s387 = sadd.f32 %s366, 0.01
        %v388 = vstv %s387
        %vm389 = vcmp.le.f32.partialorder %v385, %v388
        %s390 = ssub.f32 %s368, 0.01
        %v391 = vstv %s390
        %vm392 = vcmp.ge.f32.partialorder %v385, %v391
        %vm393 = vmand %vm389, %vm392
        %s394 = sadd.f32 %s370, 0.01
        %v395 = vstv %s394
        %vm396 = vcmp.le.f32.partialorder %v386, %v395
        %vm397 = vmand %vm393, %vm396
        %s398 = ssub.f32 %s372, 0.01
        %v399 = vstv %s398
        %vm400 = vcmp.ge.f32.partialorder %v386, %v399
        %vm401 = vmand %vm397, %vm400
        %vm402 = vcmp.gt.f32.partialorder %v384, 0.0
        %vm403 = vmand %vm401, %vm402
        %vm404 = vcmp.lt.f32.partialorder %v384, %v356
        %vm405 = vmand %vm403, %vm404
        %v406 = vsel %vm405, %v384, %v356
        %v407 = vsel %vm405, %v373, %v357
        %v408 = vsel %vm405, %v375, %v358
        %s409 = sadd.s32 %s213, 28
        %s410 = sld [smem:[#allocation2 + %s409]]
        %s411 = sadd.s32 %s213, 29
        %s412 = sld [smem:[#allocation2 + %s411]]
        %s413 = sadd.s32 %s213, 30
        %s414 = sld [smem:[#allocation2 + %s413]]
        %s415 = sadd.s32 %s213, 31
        %s416 = sld [smem:[#allocation2 + %s415]]
        %s417 = sadd.s32 %s213, 32
        %s418 = sld [smem:[#allocation2 + %s417]]
        %s419 = sadd.s32 %s213, 33
        %s420 = sld [smem:[#allocation2 + %s419]]
        %s421 = sadd.s32 %s213, 34
        %s422 = sld [smem:[#allocation2 + %s421]]
        %v423 = vstv %s410
        %v424 = vmul.f32 %v210, %v423
        %v425 = vstv %s412
        %v426 = vmul.f32 %v212, %v425
        %v427 = vadd.f32 %v424, %v426
        %v428 = vrcp.pop %v427
        %v429 = vmul.f32 %v427, %v428
        %v430 = vsub.f32 2.0, %v429
        %v431 = vmul.f32 %v428, %v430
        %s432 = ssub.f32 0.0, %s414
        %v433 = vstv %s432
        %v434 = vmul.f32 %v433, %v431
        %v435 = vmul.f32 %v434, %v210
        %v436 = vmul.f32 %v434, %v212
        %s437 = sadd.f32 %s416, 0.01
        %v438 = vstv %s437
        %vm439 = vcmp.le.f32.partialorder %v435, %v438
        %s440 = ssub.f32 %s418, 0.01
        %v441 = vstv %s440
        %vm442 = vcmp.ge.f32.partialorder %v435, %v441
        %vm443 = vmand %vm439, %vm442
        %s444 = sadd.f32 %s420, 0.01
        %v445 = vstv %s444
        %vm446 = vcmp.le.f32.partialorder %v436, %v445
        %vm447 = vmand %vm443, %vm446
        %s448 = ssub.f32 %s422, 0.01
        %v449 = vstv %s448
        %vm450 = vcmp.ge.f32.partialorder %v436, %v449
        %vm451 = vmand %vm447, %vm450
        %vm452 = vcmp.gt.f32.partialorder %v434, 0.0
        %vm453 = vmand %vm451, %vm452
        %vm454 = vcmp.lt.f32.partialorder %v434, %v406
        %vm455 = vmand %vm453, %vm454
        %v456 = vsel %vm455, %v434, %v406
        %v457 = vsel %vm455, %v423, %v407
        %v458 = vsel %vm455, %v425, %v408
        %s459 = sadd.s32 %s213, 35
        %s460 = sld [smem:[#allocation2 + %s459]]
        %s461 = sadd.s32 %s213, 36
        %s462 = sld [smem:[#allocation2 + %s461]]
        %s463 = sadd.s32 %s213, 37
        %s464 = sld [smem:[#allocation2 + %s463]]
        %s465 = sadd.s32 %s213, 38
        %s466 = sld [smem:[#allocation2 + %s465]]
        %s467 = sadd.s32 %s213, 39
        %s468 = sld [smem:[#allocation2 + %s467]]
        %s469 = sadd.s32 %s213, 40
        %s470 = sld [smem:[#allocation2 + %s469]]
        %s471 = sadd.s32 %s213, 41
        %s472 = sld [smem:[#allocation2 + %s471]]
        %v473 = vstv %s460
        %v474 = vmul.f32 %v210, %v473
        %v475 = vstv %s462
        %v476 = vmul.f32 %v212, %v475
        %v477 = vadd.f32 %v474, %v476
        %v478 = vrcp.pop %v477
        %v479 = vmul.f32 %v477, %v478
        %v480 = vsub.f32 2.0, %v479
        %v481 = vmul.f32 %v478, %v480
        %s482 = ssub.f32 0.0, %s464
        %v483 = vstv %s482
        %v484 = vmul.f32 %v483, %v481
        %v485 = vmul.f32 %v484, %v210
        %v486 = vmul.f32 %v484, %v212
        %s487 = sadd.f32 %s466, 0.01
        %v488 = vstv %s487
        %vm489 = vcmp.le.f32.partialorder %v485, %v488
        %s490 = ssub.f32 %s468, 0.01
        %v491 = vstv %s490
        %vm492 = vcmp.ge.f32.partialorder %v485, %v491
        %vm493 = vmand %vm489, %vm492
        %s494 = sadd.f32 %s470, 0.01
        %v495 = vstv %s494
        %vm496 = vcmp.le.f32.partialorder %v486, %v495
        %vm497 = vmand %vm493, %vm496
        %s498 = ssub.f32 %s472, 0.01
        %v499 = vstv %s498
        %vm500 = vcmp.ge.f32.partialorder %v486, %v499
        %vm501 = vmand %vm497, %vm500
        %vm502 = vcmp.gt.f32.partialorder %v484, 0.0
        %vm503 = vmand %vm501, %vm502
        %vm504 = vcmp.lt.f32.partialorder %v484, %v456
        %vm505 = vmand %vm503, %vm504
        %v506 = vsel %vm505, %v484, %v456
        %v507 = vsel %vm505, %v473, %v457
        %v508 = vsel %vm505, %v475, %v458
        %509 = vst [vmem:[%s202] sm:$0xf] %v506
        %510 = vst [vmem:[%s209] sm:$0xf] %v507
        %s511 = scalar_lea.vmem %s209, 4 [#allocation8]
        %512 = vst [vmem:[%s511] sm:$0xf] %v508
        %s513 = sand.u32 %s92, 1
        %s514 = scalar_lea.sflag [#allocation4], %s513
        %s515 = sand.u32 %s92, 1
        %s516 = smul.addr %s515, 4
        %s517 = scalar_lea.vmem [#allocation7], %s516
        %s518 = sand.u32 %s120, 1
        %s519 = scalar_lea.sflag [#allocation9], %s518
        %s520 = sand.u32 %s120, 1
        %s521 = smul.addr %s520, 8
        %s522 = scalar_lea.vmem [#allocation8], %s521
        // Predicated region
        $region37: #{tpu_custom_call.1} parent=27 // pred_check
          %p523 = pneg %p102
        $region38: #{tpu_custom_call.1} parent=27 // pred_check_branch
          %525 = sbr.rel (%p523) target = $region40
        $region39: #{tpu_custom_call.1} parent=27 // pred_region
          %s527 = ssub.s32 64, 64
          %528 = vsyncadd %s514, %s527
          %s529 = sadd.s32 %s27, %s28
          %s530 = smul.addr %s529, 64
          %s531 = scalar_lea.hbm %s2, %s530
          %s533 = sshll.u32 %s517, 4
          %s534 = int_to_ptr.vmem [resolvable:$true] %s533
          %536 = dma.vmem_to_hbm [thread:$0]  %s534, 64, %s531, %s514
        $region40: #{tpu_custom_call.1} parent=27 // pred_fallthru
          _
        // Predicated region
        $region41: #{tpu_custom_call.1} parent=27 // pred_check
          %p537 = pneg %p130
        $region42: #{tpu_custom_call.1} parent=27 // pred_check_branch
          %539 = sbr.rel (%p537) target = $region44
        $region43: #{tpu_custom_call.1} parent=27 // pred_region
          %s541 = ssub.s32 128, 128
          %542 = vsyncadd %s519, %s541
          %s543 = smul.addr %s28, 2
          %s544 = sadd.s32 %s27, %s543
          %s545 = smul.addr %s544, 64
          %s546 = scalar_lea.hbm %s3, %s545
          %s547 = sshll.u32 %s522, 4
          %s548 = int_to_ptr.vmem [resolvable:$true] %s547
          %553 = dma.vmem_to_hbm [thread:$0]  %s548, 128, %s546, %s519, 64, 64, 4
        $region44: #{tpu_custom_call.1} parent=27 // pred_fallthru
          _
      $region28: #{tpu_custom_call.1} parent=5 // pred_fallthru
        _
      %p554 = scmp.le.s32.totalorder 2, %s18
      // Predicated region
      $region45: #{tpu_custom_call.1} parent=5 // pred_check
        %p555 = pneg %p554
      $region46: #{tpu_custom_call.1} parent=5 // pred_check_branch
        %557 = sbr.rel (%p555) target = $region48
      $region47: #{tpu_custom_call.1} parent=5 // pred_region
        %s558 = ssub.s32 %s18, 2
        // Predicated region
        $region49: #{tpu_custom_call.1} parent=47 // pred_check
          %p559 = pneg %p108
        $region50: #{tpu_custom_call.1} parent=47 // pred_check_branch
          %561 = sbr.rel (%p559) target = $region52
        $region51: #{tpu_custom_call.1} parent=47 // pred_region
          %s562 = sand.u32 %s93, 1
          %s563 = scalar_lea.sflag [#allocation4], %s562
          %s564 = sand.u32 %s93, 1
          %s565 = smul.addr %s564, 4
          %s566 = scalar_lea.vmem [#allocation7], %s565
          %567 = dma.done %s563, 64
        $region52: #{tpu_custom_call.1} parent=47 // pred_fallthru
          _
        // Predicated region
        $region53: #{tpu_custom_call.1} parent=47 // pred_check
          %p568 = pneg %p136
        $region54: #{tpu_custom_call.1} parent=47 // pred_check_branch
          %570 = sbr.rel (%p568) target = $region56
        $region55: #{tpu_custom_call.1} parent=47 // pred_region
          %s571 = sand.u32 %s121, 1
          %s572 = scalar_lea.sflag [#allocation9], %s571
          %s573 = sand.u32 %s121, 1
          %s574 = smul.addr %s573, 8
          %s575 = scalar_lea.vmem [#allocation8], %s574
          %576 = dma.done %s572, 128
        $region56: #{tpu_custom_call.1} parent=47 // pred_fallthru
          _
      $region48: #{tpu_custom_call.1} parent=5 // pred_fallthru
        _
    $region6: #{tpu_custom_call.1} parent=1 // loop_footer
      %s22 = sadd.s32 1, %s18
    $region7: #{tpu_custom_call.1} parent=1 // loop_footer_branch
      %17 = sbr.rel target = $region3
    $region8: #{tpu_custom_call.1} parent=1 // loop_exit
      _
    %577 = vsyncpa [#allocation3], 1
    %s578 = scalar_lea.sflag [#allocation3], 1
    %579 = vsyncpa %s578, 1
    %580 = vsyncpa [#allocation4], 1
    %s581 = scalar_lea.sflag [#allocation4], 1
    %582 = vsyncpa %s581, 1
    %583 = vsyncpa [#allocation9], 1
    %s584 = scalar_lea.sflag [#allocation9], 1
    %585 = vsyncpa %s584, 1
    %586 = vsyncpa [#allocation5], 1
    %s587 = scalar_lea.sflag [#allocation5], 1
    %588 = vsyncpa %s587, 1

</llo_original>
